<compile_context>
chip_gen: v7x
topology: tpu7x:2x2x1
jax: 0.10.0
libtpu: 0.0.40
codegen_flags: <defaults>
</compile_context>

<pallas_src>
import functools

import jax
import jax.numpy as jnp
from jax.experimental import pallas as pl
from jax.experimental.pallas import tpu as pltpu


def _ce_kernel(final_ref, aux_ref, gt_ref, seg_ref, cls_ref, cnt_ref,
               *, ignore_index: int, hw: int, tile_p: int):
    """One (image n, pixel-tile p) grid step.

    Block layouts (classes on sublanes, pixels on lanes):
      final_ref, aux_ref        : (1, C, tile_p) logits
      gt_ref                    : (1, 1, tile_p) int32 targets
      seg_ref, cls_ref, cnt_ref : (1, 1, tile_p) f32 per-lane partial sums,
                                  resident across the pixel-tile axis (accumulators).
    """
    p = pl.program_id(1)

    @pl.when(p == 0)
    def _():
        seg_ref[...] = jnp.zeros_like(seg_ref)
        cls_ref[...] = jnp.zeros_like(cls_ref)
        cnt_ref[...] = jnp.zeros_like(cnt_ref)

    C = final_ref.shape[1]

    # --- target-dependent work: computed once per tile, reused for final & aux ---
    tgt = gt_ref[0]                                    # (1, tile_p) int32
    valid = tgt != ignore_index                        # (1, tile_p) bool

    partial_tail = (hw % tile_p) != 0                  # static Python bool
    if partial_tail:
        pix = p * tile_p + jax.lax.broadcasted_iota(jnp.int32, (1, tile_p), 1)
        in_bounds = pix < hw                           # mask the out-of-bounds tail
        valid = jnp.logical_and(valid, in_bounds)

    tgt_safe = jnp.where(valid, tgt, 0)                # (1, tile_p)
    classes = jax.lax.broadcasted_iota(jnp.int32, (C, tile_p), 0)
    onehot = classes == tgt_safe                       # (C, tile_p), hoisted/reused
    validf = valid.astype(jnp.float32)                 # (1, tile_p)

    def masked_nll(logits_ref):
        logits = logits_ref[0].astype(jnp.float32)     # (C, tile_p), f32 math
        if partial_tail:
            # Guard against unspecified data in the OOB tail of the last tile
            # (0*inf / NaN would otherwise poison the accumulator).
            logits = jnp.where(in_bounds, logits, 0.0)
        m = jnp.max(logits, axis=0, keepdims=True)                       # (1, tile_p)
        lse = jnp.log(jnp.sum(jnp.exp(logits - m), axis=0, keepdims=True)) + m
        picked = jnp.sum(jnp.where(onehot, logits, 0.0), axis=0, keepdims=True)
        return (lse - picked) * validf                                    # (1, tile_p)

    seg_ref[0] += masked_nll(final_ref)
    cls_ref[0] += masked_nll(aux_ref)
    cnt_ref[0] += validf


def _choose_tile_p(hw: int, max_tile: int = 8192) -> int:
    """Lane-tile size: multiple of 128 (or full extent when hw <= 128)."""
    if hw <= 128:
        return hw                                  # full-extent last dim is legal
    if hw <= max_tile and hw % 128 == 0:
        return hw                                  # single lane tile per image
    t = min(max_tile, hw)
    return max(128, (t // 128) * 128)              # partial tail tile masked in-kernel


def pspnet_loss(final_nchw, aux_nchw, gt_n1hw, *,
                ignore_index: int = 255, alpha: float = 0.0,
                max_tile_p: int = 8192):
    """Equivalent of PSPNetLoss.forward({'final': final, 'aux': aux}, gt)."""
    N, C, H, W = final_nchw.shape
    HW = H * W

    # Free reshapes only (no HBM transpose / pad of the logit tensors).
    final_f = final_nchw.reshape(N, C, HW)
    aux_f = aux_nchw.reshape(N, C, HW)
    gt_f = gt_n1hw.reshape(N, 1, HW).astype(jnp.int32)

    tile_p = _choose_tile_p(HW, max_tile_p)
    n_ptiles = pl.cdiv(HW, tile_p)

    kernel = functools.partial(_ce_kernel, ignore_index=ignore_index,
                               hw=HW, tile_p=tile_p)

    out_sds = jax.ShapeDtypeStruct((N, 1, tile_p), jnp.float32)
    seg_part, cls_part, cnt_part = pl.pallas_call(
        kernel,
        out_shape=(out_sds, out_sds, out_sds),
        grid_spec=pltpu.PrefetchScalarGridSpec(
            num_scalar_prefetch=0,
            grid=(N, n_ptiles),                      # reduction (pixel) axis last
            in_specs=[
                pl.BlockSpec((1, C, tile_p), lambda n, p: (n, 0, p)),
                pl.BlockSpec((1, C, tile_p), lambda n, p: (n, 0, p)),
                pl.BlockSpec((1, 1, tile_p), lambda n, p: (n, 0, p)),
            ],
            out_specs=[
                pl.BlockSpec((1, 1, tile_p), lambda n, p: (n, 0, 0)),
                pl.BlockSpec((1, 1, tile_p), lambda n, p: (n, 0, 0)),
                pl.BlockSpec((1, 1, tile_p), lambda n, p: (n, 0, 0)),
            ],
        ),
        compiler_params=pltpu.CompilerParams(
            dimension_semantics=("parallel", "arbitrary")),  # images -> megacore on v7x
    )(final_f, aux_f, gt_f)

    cnt = jnp.sum(cnt_part)
    # NOTE: if every pixel is ignore_index, cnt == 0 and the result is NaN — identical
    # to torch.nn.CrossEntropyLoss(reduction='mean', ignore_index=...).
    seg_loss = jnp.sum(seg_part) / cnt
    cls_loss = jnp.sum(cls_part) / cnt
    return seg_loss + alpha * cls_loss


def _reference_loss(final, aux, gt, ignore_index=255, alpha=0.0):
    """Pure-JAX reference matching torch.nn.CrossEntropyLoss semantics."""
    def ce(logits_nchw, tgt):
        N, C, H, W = logits_nchw.shape
        logits = jnp.transpose(logits_nchw, (0, 2, 3, 1)).reshape(-1, C)
        t = tgt.reshape(-1).astype(jnp.int32)
        valid = t != ignore_index
        ts = jnp.where(valid, t, 0)
        logp = jax.nn.log_softmax(logits.astype(jnp.float32), axis=-1)
        nll = -jnp.take_along_axis(logp, ts[:, None], axis=-1)[:, 0]
        nll = jnp.where(valid, nll, 0.0)
        return jnp.sum(nll) / jnp.sum(valid.astype(jnp.float32))
    return ce(final, gt) + alpha * ce(aux, gt)


if __name__ == "__main__":
    key = jax.random.PRNGKey(0)
    k1, k2, k3, k4 = jax.random.split(key, 4)

    N, C, H, W = 2, 8, 16, 16
    final = jax.random.normal(k1, (N, C, H, W), dtype=jnp.float32)
    aux = jax.random.normal(k2, (N, C, H, W), dtype=jnp.float32)

    gt = jax.random.randint(k3, (N, 1, H, W), 0, C, dtype=jnp.int32)
    # sprinkle some ignored pixels (ignore_index = 255)
    ignore_mask = jax.random.bernoulli(k4, p=0.1, shape=(N, 1, H, W))
    gt = jnp.where(ignore_mask, 255, gt)

    alpha = 0.4
    loss = pspnet_loss(final, aux, gt, ignore_index=255, alpha=alpha)
    loss = jax.block_until_ready(loss)

    ref = _reference_loss(final, aux, gt, ignore_index=255, alpha=alpha)
    assert jnp.allclose(loss, ref, rtol=1e-5, atol=1e-5), (loss, ref)

    print("KERNEL_OK")
</pallas_src>

<mosaic_0001>
module attributes {stable_mosaic.version = 11 : i64} {
  func.func @_ce_kernel(%arg0: i32, %arg1: i32, %arg2: memref<1x8x256xf32, #tpu.memory_space<vmem>>, %arg3: memref<1x8x256xf32, #tpu.memory_space<vmem>>, %arg4: memref<1x1x256xi32, #tpu.memory_space<vmem>>, %arg5: memref<1x1x256xf32, #tpu.memory_space<vmem>>, %arg6: memref<1x1x256xf32, #tpu.memory_space<vmem>>, %arg7: memref<1x1x256xf32, #tpu.memory_space<vmem>>) attributes {dimension_semantics = [#tpu.dimension_semantics<parallel>, #tpu.dimension_semantics<arbitrary>], iteration_bounds = array<i64: 2, 1>, scalar_prefetch = 0 : i64, scratch_operands = 0 : i64, tpu.core_type = #tpu.core_type<tc>, window_params = [{transform_indices = @transform_0, window_bounds = array<i64: 1, 8, 256>}, {transform_indices = @transform_1, window_bounds = array<i64: 1, 8, 256>}, {transform_indices = @transform_2, window_bounds = array<i64: 1, 1, 256>}, {transform_indices = @transform_3, window_bounds = array<i64: 1, 1, 256>}, {transform_indices = @transform_4, window_bounds = array<i64: 1, 1, 256>}, {transform_indices = @transform_5, window_bounds = array<i64: 1, 1, 256>}]} {
    %c0_i32 = arith.constant 0 : i32
    %0 = arith.cmpi eq, %arg1, %c0_i32 : i32
    %1 = arith.extui %0 : i1 to i32
    %c0_i32_0 = arith.constant 0 : i32
    %2 = arith.cmpi ne, %1, %c0_i32_0 : i32
    scf.if %2 {
      %cst_35 = arith.constant 0.000000e+00 : f32
      %66 = vector.broadcast %cst_35 : f32 to vector<1x1x256xf32>
      %c0_36 = arith.constant 0 : index
      %c0_37 = arith.constant 0 : index
      %c0_38 = arith.constant 0 : index
      %67 = vector.load %arg5[%c0_36, %c0_37, %c0_38] : memref<1x1x256xf32, #tpu.memory_space<vmem>>, vector<1x1x256xf32>
      tpu.vector_store %arg5[%c0_36, %c0_37, %c0_38], %66 {strides = array<i32>} : memref<1x1x256xf32, #tpu.memory_space<vmem>>, vector<1x1x256xf32>,
      %cst_39 = arith.constant 0.000000e+00 : f32
      %68 = vector.broadcast %cst_39 : f32 to vector<1x1x256xf32>
      %c0_40 = arith.constant 0 : index
      %c0_41 = arith.constant 0 : index
      %c0_42 = arith.constant 0 : index
      %69 = vector.load %arg6[%c0_40, %c0_41, %c0_42] : memref<1x1x256xf32, #tpu.memory_space<vmem>>, vector<1x1x256xf32>
      tpu.vector_store %arg6[%c0_40, %c0_41, %c0_42], %68 {strides = array<i32>} : memref<1x1x256xf32, #tpu.memory_space<vmem>>, vector<1x1x256xf32>,
      %cst_43 = arith.constant 0.000000e+00 : f32
      %70 = vector.broadcast %cst_43 : f32 to vector<1x1x256xf32>
      %c0_44 = arith.constant 0 : index
      %c0_45 = arith.constant 0 : index
      %c0_46 = arith.constant 0 : index
      %71 = vector.load %arg7[%c0_44, %c0_45, %c0_46] : memref<1x1x256xf32, #tpu.memory_space<vmem>>, vector<1x1x256xf32>
      tpu.vector_store %arg7[%c0_44, %c0_45, %c0_46], %70 {strides = array<i32>} : memref<1x1x256xf32, #tpu.memory_space<vmem>>, vector<1x1x256xf32>,
    } else {
    }
    %c0 = arith.constant 0 : index
    %c0_1 = arith.constant 0 : index
    %c0_2 = arith.constant 0 : index
    %3 = vector.load %arg4[%c0, %c0_1, %c0_2] : memref<1x1x256xi32, #tpu.memory_space<vmem>>, vector<1x1x256xi32>
    %4 = vector.shape_cast %3 : vector<1x1x256xi32> to vector<1x256xi32>
    %c255_i32 = arith.constant 255 : i32
    %5 = vector.broadcast %c255_i32 : i32 to vector<1x256xi32>
    %6 = arith.cmpi ne, %4, %5 : vector<1x256xi32>
    %c0_i32_3 = arith.constant 0 : i32
    %7 = vector.broadcast %c0_i32_3 : i32 to vector<1x256xi32>
    %8 = arith.select %6, %4, %7 : vector<1x256xi1>, vector<1x256xi32>
    %9 = tpu.iota {dimensions = array<i32: 0>} : vector<8x256xi32>
    %10 = vector.broadcast %8 : vector<1x256xi32> to vector<8x256xi32>
    %11 = arith.cmpi eq, %9, %10 : vector<8x256xi32>
    %12 = arith.extui %6 : vector<1x256xi1> to vector<1x256xi32>
    %13 = arith.sitofp %12 : vector<1x256xi32> to vector<1x256xf32>
    %c0_4 = arith.constant 0 : index
    %c0_5 = arith.constant 0 : index
    %c0_6 = arith.constant 0 : index
    %14 = vector.load %arg5[%c0_4, %c0_5, %c0_6] : memref<1x1x256xf32, #tpu.memory_space<vmem>>, vector<1x1x256xf32>
    %15 = vector.shape_cast %14 : vector<1x1x256xf32> to vector<1x256xf32>
    %c0_7 = arith.constant 0 : index
    %c0_8 = arith.constant 0 : index
    %c0_9 = arith.constant 0 : index
    %16 = vector.load %arg2[%c0_7, %c0_8, %c0_9] : memref<1x8x256xf32, #tpu.memory_space<vmem>>, vector<1x8x256xf32>
    %17 = vector.shape_cast %16 : vector<1x8x256xf32> to vector<8x256xf32>
    %cst = arith.constant dense<0xFF800000> : vector<256xf32>
    %18 = vector.multi_reduction <maximumf>, %17, %cst [0] : vector<8x256xf32> to vector<256xf32>
    %19 = vector.shape_cast %18 : vector<256xf32> to vector<1x256xf32>
    %20 = vector.broadcast %19 : vector<1x256xf32> to vector<8x256xf32>
    %21 = arith.subf %17, %20 : vector<8x256xf32>
    %22 = math.exp %21 : vector<8x256xf32>
    %cst_10 = arith.constant dense<0.000000e+00> : vector<256xf32>
    %23 = vector.multi_reduction <add>, %22, %cst_10 [0] : vector<8x256xf32> to vector<256xf32>
    %24 = vector.shape_cast %23 : vector<256xf32> to vector<1x256xf32>
    %25 = math.log %24 : vector<1x256xf32>
    %26 = arith.addf %25, %19 : vector<1x256xf32>
    %cst_11 = arith.constant 0.000000e+00 : f32
    %27 = vector.broadcast %cst_11 : f32 to vector<8x256xf32>
    %28 = arith.select %11, %17, %27 : vector<8x256xi1>, vector<8x256xf32>
    %cst_12 = arith.constant dense<0.000000e+00> : vector<256xf32>
    %29 = vector.multi_reduction <add>, %28, %cst_12 [0] : vector<8x256xf32> to vector<256xf32>
    %30 = vector.shape_cast %29 : vector<256xf32> to vector<1x256xf32>
    %31 = arith.subf %26, %30 : vector<1x256xf32>
    %32 = arith.mulf %31, %13 : vector<1x256xf32>
    %33 = arith.addf %15, %32 : vector<1x256xf32>
    %c0_13 = arith.constant 0 : index
    %c0_14 = arith.constant 0 : index
    %c0_15 = arith.constant 0 : index
    %34 = vector.load %arg5[%c0_13, %c0_14, %c0_15] : memref<1x1x256xf32, #tpu.memory_space<vmem>>, vector<1x1x256xf32>
    %35 = vector.shape_cast %34 : vector<1x1x256xf32> to vector<1x256xf32>
    %36 = vector.shape_cast %33 : vector<1x256xf32> to vector<1x1x256xf32>
    tpu.vector_store %arg5[%c0_13, %c0_14, %c0_15], %36 {strides = array<i32>} : memref<1x1x256xf32, #tpu.memory_space<vmem>>, vector<1x1x256xf32>,
    %c0_16 = arith.constant 0 : index
    %c0_17 = arith.constant 0 : index
    %c0_18 = arith.constant 0 : index
    %37 = vector.load %arg6[%c0_16, %c0_17, %c0_18] : memref<1x1x256xf32, #tpu.memory_space<vmem>>, vector<1x1x256xf32>
    %38 = vector.shape_cast %37 : vector<1x1x256xf32> to vector<1x256xf32>
    %c0_19 = arith.constant 0 : index
    %c0_20 = arith.constant 0 : index
    %c0_21 = arith.constant 0 : index
    %39 = vector.load %arg3[%c0_19, %c0_20, %c0_21] : memref<1x8x256xf32, #tpu.memory_space<vmem>>, vector<1x8x256xf32>
    %40 = vector.shape_cast %39 : vector<1x8x256xf32> to vector<8x256xf32>
    %cst_22 = arith.constant dense<0xFF800000> : vector<256xf32>
    %41 = vector.multi_reduction <maximumf>, %40, %cst_22 [0] : vector<8x256xf32> to vector<256xf32>
    %42 = vector.shape_cast %41 : vector<256xf32> to vector<1x256xf32>
    %43 = vector.broadcast %42 : vector<1x256xf32> to vector<8x256xf32>
    %44 = arith.subf %40, %43 : vector<8x256xf32>
    %45 = math.exp %44 : vector<8x256xf32>
    %cst_23 = arith.constant dense<0.000000e+00> : vector<256xf32>
    %46 = vector.multi_reduction <add>, %45, %cst_23 [0] : vector<8x256xf32> to vector<256xf32>
    %47 = vector.shape_cast %46 : vector<256xf32> to vector<1x256xf32>
    %48 = math.log %47 : vector<1x256xf32>
    %49 = arith.addf %48, %42 : vector<1x256xf32>
    %cst_24 = arith.constant 0.000000e+00 : f32
    %50 = vector.broadcast %cst_24 : f32 to vector<8x256xf32>
    %51 = arith.select %11, %40, %50 : vector<8x256xi1>, vector<8x256xf32>
    %cst_25 = arith.constant dense<0.000000e+00> : vector<256xf32>
    %52 = vector.multi_reduction <add>, %51, %cst_25 [0] : vector<8x256xf32> to vector<256xf32>
    %53 = vector.shape_cast %52 : vector<256xf32> to vector<1x256xf32>
    %54 = arith.subf %49, %53 : vector<1x256xf32>
    %55 = arith.mulf %54, %13 : vector<1x256xf32>
    %56 = arith.addf %38, %55 : vector<1x256xf32>
    %c0_26 = arith.constant 0 : index
    %c0_27 = arith.constant 0 : index
    %c0_28 = arith.constant 0 : index
    %57 = vector.load %arg6[%c0_26, %c0_27, %c0_28] : memref<1x1x256xf32, #tpu.memory_space<vmem>>, vector<1x1x256xf32>
    %58 = vector.shape_cast %57 : vector<1x1x256xf32> to vector<1x256xf32>
    %59 = vector.shape_cast %56 : vector<1x256xf32> to vector<1x1x256xf32>
    tpu.vector_store %arg6[%c0_26, %c0_27, %c0_28], %59 {strides = array<i32>} : memref<1x1x256xf32, #tpu.memory_space<vmem>>, vector<1x1x256xf32>,
    %c0_29 = arith.constant 0 : index
    %c0_30 = arith.constant 0 : index
    %c0_31 = arith.constant 0 : index
    %60 = vector.load %arg7[%c0_29, %c0_30, %c0_31] : memref<1x1x256xf32, #tpu.memory_space<vmem>>, vector<1x1x256xf32>
    %61 = vector.shape_cast %60 : vector<1x1x256xf32> to vector<1x256xf32>
    %62 = arith.addf %61, %13 : vector<1x256xf32>
    %c0_32 = arith.constant 0 : index
    %c0_33 = arith.constant 0 : index
    %c0_34 = arith.constant 0 : index
    %63 = vector.load %arg7[%c0_32, %c0_33, %c0_34] : memref<1x1x256xf32, #tpu.memory_space<vmem>>, vector<1x1x256xf32>
    %64 = vector.shape_cast %63 : vector<1x1x256xf32> to vector<1x256xf32>
    %65 = vector.shape_cast %62 : vector<1x256xf32> to vector<1x1x256xf32>
    tpu.vector_store %arg7[%c0_32, %c0_33, %c0_34], %65 {strides = array<i32>} : memref<1x1x256xf32, #tpu.memory_space<vmem>>, vector<1x1x256xf32>,
    return
  }
  func.func @transform_0(%arg0: i32, %arg1: i32) -> (i32, i32, i32) {
    %c0_i32 = arith.constant 0 : i32
    %c0_i32_0 = arith.constant 0 : i32
    return %arg0, %c0_i32, %arg1 : i32, i32, i32
  }
  func.func @transform_1(%arg0: i32, %arg1: i32) -> (i32, i32, i32) {
    %c0_i32 = arith.constant 0 : i32
    %c0_i32_0 = arith.constant 0 : i32
    return %arg0, %c0_i32, %arg1 : i32, i32, i32
  }
  func.func @transform_2(%arg0: i32, %arg1: i32) -> (i32, i32, i32) {
    %c0_i32 = arith.constant 0 : i32
    %c0_i32_0 = arith.constant 0 : i32
    return %arg0, %c0_i32, %arg1 : i32, i32, i32
  }
  func.func @transform_3(%arg0: i32, %arg1: i32) -> (i32, i32, i32) {
    %c0_i32 = arith.constant 0 : i32
    %c0_i32_0 = arith.constant 0 : i32
    %c0_i32_1 = arith.constant 0 : i32
    return %arg0, %c0_i32, %c0_i32_0 : i32, i32, i32
  }
  func.func @transform_4(%arg0: i32, %arg1: i32) -> (i32, i32, i32) {
    %c0_i32 = arith.constant 0 : i32
    %c0_i32_0 = arith.constant 0 : i32
    %c0_i32_1 = arith.constant 0 : i32
    return %arg0, %c0_i32, %c0_i32_0 : i32, i32, i32
  }
  func.func @transform_5(%arg0: i32, %arg1: i32) -> (i32, i32, i32) {
    %c0_i32 = arith.constant 0 : i32
    %c0_i32_0 = arith.constant 0 : i32
    %c0_i32_1 = arith.constant 0 : i32
    return %arg0, %c0_i32, %c0_i32_0 : i32, i32, i32
  }
}

</mosaic_0001>

<llo_original>
// kernel: tpu_custom_call.1
$region0: #{tpu_custom_call.1}
  #allocation0 [shape = 'u32[]', space=smem, size = 0x4, offset = 0x4, fixed_abs, tag = 'smem constant byte address 0x4 - core index']
  #allocation1 [shape = 'u32[144,128]{1,0:T(1,128)}', space=vmem, size = 0x12000, scoped, tag = 'internal scratch']
  %s0 = inlined_call_operand.hbm [shape: f32[2,8,256], index: 0, kind: input, shape index: {}]
  %s1 = inlined_call_operand.hbm [shape: f32[2,8,256], index: 1, kind: input, shape index: {}]
  %s2 = inlined_call_operand.vmem [shape: s32[2,1,256], index: 2, kind: input, shape index: {}]
  %s3 = inlined_call_operand.hbm [shape: f32[2,1,256], index: 3, kind: output, shape index: {0}]
  %s4 = inlined_call_operand.hbm [shape: f32[2,1,256], index: 4, kind: output, shape index: {1}]
  %s5 = inlined_call_operand.hbm [shape: f32[2,1,256], index: 5, kind: output, shape index: {2}]
  %6 = xla_tuple %s3, %s4, %s5
  %s7 = sld [smem:[#allocation0]]
  $region73: #{tpu_custom_call.1} parent=0
    _
  %s9 = ssub.s32 1, %s7
  %s10 = scalar_select 0, %s9, %s7
  $region1: #{tpu_custom_call.1} parent=0
    #allocation2 [shape = 'u8[16384]{0}', space=vmem, size = 0x4000, scoped, tag = 'input window, operand 0']
    #allocation3 [shape = 's32[2]{0}', space=sflag, size = 0x8, scoped, tag = 'scoped memory for tpu_custom_call.1']
    #allocation4 [shape = 's32[2]{0}', space=sflag, size = 0x8, scoped, tag = 'scoped memory for tpu_custom_call.1']
    #allocation5 [shape = 'u8[16384]{0}', space=vmem, size = 0x4000, scoped, tag = 'input window, operand 1']
    #allocation6 [shape = 's32[2]{0}', space=sflag, size = 0x8, scoped, tag = 'scoped memory for tpu_custom_call.1']
    #allocation7 [shape = 'u8[2048]{0}', space=vmem, size = 0x800, scoped, tag = 'output window, operand 0']
    #allocation8 [shape = 'u8[2048]{0}', space=vmem, size = 0x800, scoped, tag = 'output window, operand 1']
    #allocation9 [shape = 's32[2]{0}', space=sflag, size = 0x8, scoped, tag = 'scoped memory for tpu_custom_call.1']
    #allocation10 [shape = 'u8[2048]{0}', space=vmem, size = 0x800, scoped, tag = 'output window, operand 2']
    %11 = vsyncpa [#allocation3], 0
    %s12 = scalar_lea.sflag [#allocation3], 1
    %13 = vsyncpa %s12, 0
    %14 = vsyncpa [#allocation6], 0
    %s15 = scalar_lea.sflag [#allocation6], 1
    %16 = vsyncpa %s15, 0
    %17 = vsyncpa [#allocation4], 0
    %s18 = scalar_lea.sflag [#allocation4], 1
    %19 = vsyncpa %s18, 0
    %20 = vsyncpa [#allocation9], 0
    %s21 = scalar_lea.sflag [#allocation9], 1
    %22 = vsyncpa %s21, 0
    loop: start=0, step=1, limit=4
    $region2: #{tpu_custom_call.1} parent=1 // loop_pre_header
      _
    $region3: #{tpu_custom_call.1} parent=1 // loop_header
      %s24 = sphi 0, %s28
      %p25 = scmp.ge.s32.totalorder %s24, 4
      %s31 = sphi 0, %s43
      %s32 = sphi 0, %s39
      %s33 = sphi 0, %s31
      %s34 = sphi 0, %s32
      %s35 = sphi 0, %s33
      %s36 = sphi 0, %s34
      %s48 = sphi 0, %s50
      %s51 = sphi 0, %s48
      %s52 = sphi 0, %s51
      %s68 = sphi 0, %s52
      %s76 = sphi 0, %s78
      %s79 = sphi 0, %s76
      %s80 = sphi 0, %s79
      %s96 = sphi 0, %s80
      %s104 = sphi 0, %s106
      %s107 = sphi 0, %s104
      %s108 = sphi 0, %s107
      %s124 = sphi 0, %s108
      %s130 = sphi 0, %s132
      %s133 = sphi 0, %s130
      %s134 = sphi 0, %s133
      %s150 = sphi 0, %s134
      %s156 = sphi 0, %s158
      %s159 = sphi 0, %s156
      %s160 = sphi 0, %s159
      %s176 = sphi 0, %s160
      %s182 = sphi 0, %s184
      %s185 = sphi 0, %s182
      %s186 = sphi 0, %s185
      %s202 = sphi 0, %s186
    $region4: #{tpu_custom_call.1} parent=1 // loop_header_branch
      %27 = sbr.rel (%p25) target = $region8
    $region5: #{tpu_custom_call.1} parent=1 // loop_body
      %s29 = ssub.s32 %s24, 1
      %s30 = ssub.s32 %s24, 2
      %s37 = sadd.s32 1, %s32
      %p38 = scmp.ge.s32.totalorder %s37, 1
      %s39 = scalar_select %p38, 0, %s37
      %s40 = sadd.s32 1, %s31
      %s41 = scalar_select %p38, %s40, %s31
      %p42 = scmp.ge.s32.totalorder %s41, 2
      %s43 = scalar_select %p42, 0, %s41
      %s44 = ssub.s32 %s31, %s43
      %s45 = ssub.s32 %s32, %s39
      %s46 = sor.u32 %s44, %s45
      %p47 = scmp.eq.s32.totalorder %s46, 0
      %s49 = sadd.s32 %s48, 1
      %s50 = scalar_select %p47, %s48, %s49
      %p53 = pneg %p47
      %p54 = scmp.eq.s32.totalorder %s24, 1
      %p55 = por %p53, %p54
      %p56 = scmp.ne.s32.totalorder %s48, %s51
      %p57 = scmp.eq.s32.totalorder %s24, 0
      %p58 = por %p56, %p57
      %p59 = scmp.ne.s32.totalorder %s48, %s51
      %p60 = scmp.eq.s32.totalorder %s29, 1
      %p61 = por %p59, %p60
      %p62 = scmp.ne.s32.totalorder %s51, %s52
      %p63 = scmp.eq.s32.totalorder %s29, 0
      %p64 = por %p62, %p63
      %p65 = scmp.ne.s32.totalorder %s51, %s52
      %p66 = scmp.eq.s32.totalorder %s30, 1
      %p67 = por %p65, %p66
      %p69 = scmp.ne.s32.totalorder %s52, %s68
      %p70 = scmp.eq.s32.totalorder %s30, 0
      %p71 = por %p69, %p70
      %s72 = ssub.s32 %s31, %s43
      %s73 = ssub.s32 %s32, %s39
      %s74 = sor.u32 %s72, %s73
      %p75 = scmp.eq.s32.totalorder %s74, 0
      %s77 = sadd.s32 %s76, 1
      %s78 = scalar_select %p75, %s76, %s77
      %p81 = pneg %p75
      %p82 = scmp.eq.s32.totalorder %s24, 1
      %p83 = por %p81, %p82
      %p84 = scmp.ne.s32.totalorder %s76, %s79
      %p85 = scmp.eq.s32.totalorder %s24, 0
      %p86 = por %p84, %p85
      %p87 = scmp.ne.s32.totalorder %s76, %s79
      %p88 = scmp.eq.s32.totalorder %s29, 1
      %p89 = por %p87, %p88
      %p90 = scmp.ne.s32.totalorder %s79, %s80
      %p91 = scmp.eq.s32.totalorder %s29, 0
      %p92 = por %p90, %p91
      %p93 = scmp.ne.s32.totalorder %s79, %s80
      %p94 = scmp.eq.s32.totalorder %s30, 1
      %p95 = por %p93, %p94
      %p97 = scmp.ne.s32.totalorder %s80, %s96
      %p98 = scmp.eq.s32.totalorder %s30, 0
      %p99 = por %p97, %p98
      %s100 = ssub.s32 %s31, %s43
      %s101 = ssub.s32 %s32, %s39
      %s102 = sor.u32 %s100, %s101
      %p103 = scmp.eq.s32.totalorder %s102, 0
      %s105 = sadd.s32 %s104, 1
      %s106 = scalar_select %p103, %s104, %s105
      %p109 = pneg %p103
      %p110 = scmp.eq.s32.totalorder %s24, 1
      %p111 = por %p109, %p110
      %p112 = scmp.ne.s32.totalorder %s104, %s107
      %p113 = scmp.eq.s32.totalorder %s24, 0
      %p114 = por %p112, %p113
      %p115 = scmp.ne.s32.totalorder %s104, %s107
      %p116 = scmp.eq.s32.totalorder %s29, 1
      %p117 = por %p115, %p116
      %p118 = scmp.ne.s32.totalorder %s107, %s108
      %p119 = scmp.eq.s32.totalorder %s29, 0
      %p120 = por %p118, %p119
      %p121 = scmp.ne.s32.totalorder %s107, %s108
      %p122 = scmp.eq.s32.totalorder %s30, 1
      %p123 = por %p121, %p122
      %p125 = scmp.ne.s32.totalorder %s108, %s124
      %p126 = scmp.eq.s32.totalorder %s30, 0
      %p127 = por %p125, %p126
      %s128 = ssub.s32 %s31, %s43
      %p129 = scmp.eq.s32.totalorder %s128, 0
      %s131 = sadd.s32 %s130, 1
      %s132 = scalar_select %p129, %s130, %s131
      %p135 = pneg %p129
      %p136 = scmp.eq.s32.totalorder %s24, 1
      %p137 = por %p135, %p136
      %p138 = scmp.ne.s32.totalorder %s130, %s133
      %p139 = scmp.eq.s32.totalorder %s24, 0
      %p140 = por %p138, %p139
      %p141 = scmp.ne.s32.totalorder %s130, %s133
      %p142 = scmp.eq.s32.totalorder %s29, 1
      %p143 = por %p141, %p142
      %p144 = scmp.ne.s32.totalorder %s133, %s134
      %p145 = scmp.eq.s32.totalorder %s29, 0
      %p146 = por %p144, %p145
      %p147 = scmp.ne.s32.totalorder %s133, %s134
      %p148 = scmp.eq.s32.totalorder %s30, 1
      %p149 = por %p147, %p148
      %p151 = scmp.ne.s32.totalorder %s134, %s150
      %p152 = scmp.eq.s32.totalorder %s30, 0
      %p153 = por %p151, %p152
      %s154 = ssub.s32 %s31, %s43
      %p155 = scmp.eq.s32.totalorder %s154, 0
      %s157 = sadd.s32 %s156, 1
      %s158 = scalar_select %p155, %s156, %s157
      %p161 = pneg %p155
      %p162 = scmp.eq.s32.totalorder %s24, 1
      %p163 = por %p161, %p162
      %p164 = scmp.ne.s32.totalorder %s156, %s159
      %p165 = scmp.eq.s32.totalorder %s24, 0
      %p166 = por %p164, %p165
      %p167 = scmp.ne.s32.totalorder %s156, %s159
      %p168 = scmp.eq.s32.totalorder %s29, 1
      %p169 = por %p167, %p168
      %p170 = scmp.ne.s32.totalorder %s159, %s160
      %p171 = scmp.eq.s32.totalorder %s29, 0
      %p172 = por %p170, %p171
      %p173 = scmp.ne.s32.totalorder %s159, %s160
      %p174 = scmp.eq.s32.totalorder %s30, 1
      %p175 = por %p173, %p174
      %p177 = scmp.ne.s32.totalorder %s160, %s176
      %p178 = scmp.eq.s32.totalorder %s30, 0
      %p179 = por %p177, %p178
      %s180 = ssub.s32 %s31, %s43
      %p181 = scmp.eq.s32.totalorder %s180, 0
      %s183 = sadd.s32 %s182, 1
      %s184 = scalar_select %p181, %s182, %s183
      %p187 = pneg %p181
      %p188 = scmp.eq.s32.totalorder %s24, 1
      %p189 = por %p187, %p188
      %p190 = scmp.ne.s32.totalorder %s182, %s185
      %p191 = scmp.eq.s32.totalorder %s24, 0
      %p192 = por %p190, %p191
      %p193 = scmp.ne.s32.totalorder %s182, %s185
      %p194 = scmp.eq.s32.totalorder %s29, 1
      %p195 = por %p193, %p194
      %p196 = scmp.ne.s32.totalorder %s185, %s186
      %p197 = scmp.eq.s32.totalorder %s29, 0
      %p198 = por %p196, %p197
      %p199 = scmp.ne.s32.totalorder %s185, %s186
      %p200 = scmp.eq.s32.totalorder %s30, 1
      %p201 = por %p199, %p200
      %p203 = scmp.ne.s32.totalorder %s186, %s202
      %p204 = scmp.eq.s32.totalorder %s30, 0
      %p205 = por %p203, %p204
      %p206 = scmp.le.s32.totalorder 1, %s24
      %p207 = scmp.lt.s32.totalorder %s24, 3
      %p208 = pnand %p206, %p207
      %p209 = pneg %p208
      // Predicated region
      $region9: #{tpu_custom_call.1} parent=5 // pred_check
        _
      $region10: #{tpu_custom_call.1} parent=5 // pred_check_branch
        %211 = sbr.rel (%p208) target = $region12
      $region11: #{tpu_custom_call.1} parent=5 // pred_region
        %s212 = ssub.s32 %s24, 1
      $region12: #{tpu_custom_call.1} parent=5 // pred_fallthru
        _
      %p213 = scmp.lt.s32.totalorder %s24, 2
      // Predicated region
      $region13: #{tpu_custom_call.1} parent=5 // pred_check
        %p214 = pneg %p213
      $region14: #{tpu_custom_call.1} parent=5 // pred_check_branch
        %216 = sbr.rel (%p214) target = $region16
      $region15: #{tpu_custom_call.1} parent=5 // pred_region
        // Predicated region
        $region17: #{tpu_custom_call.1} parent=15 // pred_check
          %p217 = pneg %p58
        $region18: #{tpu_custom_call.1} parent=15 // pred_check_branch
          %219 = sbr.rel (%p217) target = $region20
        $region19: #{tpu_custom_call.1} parent=15 // pred_region
          %s220 = sand.u32 %s48, 1
          %s221 = scalar_lea.sflag [#allocation3], %s220
          %s222 = sand.u32 %s48, 1
          %s223 = smul.addr %s222, 16
          %s224 = scalar_lea.vmem [#allocation2], %s223
          %s225 = smul.u32 2, %s32
          %s227 = ssub.s32 256, 256
          %228 = vsyncadd %s221, %s227
          %s229 = smul.addr %s31, 2
          %s230 = sadd.s32 %s225, %s229
          %s231 = smul.addr %s230, 128
          %s232 = scalar_lea.hbm %s0, %s231
          %s234 = sshll.u32 %s224, 4
          %s235 = int_to_ptr.vmem [resolvable:$true] %s234
          %237 = dma.hbm_to_vmem [thread:$0]  %s232, 256, %s235, %s221
        $region20: #{tpu_custom_call.1} parent=15 // pred_fallthru
          _
        // Predicated region
        $region21: #{tpu_custom_call.1} parent=15 // pred_check
          %p238 = pneg %p86
        $region22: #{tpu_custom_call.1} parent=15 // pred_check_branch
          %240 = sbr.rel (%p238) target = $region24
        $region23: #{tpu_custom_call.1} parent=15 // pred_region
          %s241 = sand.u32 %s76, 1
          %s242 = scalar_lea.sflag [#allocation6], %s241
          %s243 = sand.u32 %s76, 1
          %s244 = smul.addr %s243, 16
          %s245 = scalar_lea.vmem [#allocation5], %s244
          %s246 = smul.u32 2, %s32
          %s248 = ssub.s32 256, 256
          %249 = vsyncadd %s242, %s248
          %s250 = smul.addr %s31, 2
          %s251 = sadd.s32 %s246, %s250
          %s252 = smul.addr %s251, 128
          %s253 = scalar_lea.hbm %s1, %s252
          %s255 = sshll.u32 %s245, 4
          %s256 = int_to_ptr.vmem [resolvable:$true] %s255
          %258 = dma.hbm_to_vmem [thread:$0]  %s253, 256, %s256, %s242
        $region24: #{tpu_custom_call.1} parent=15 // pred_fallthru
          _
        // Predicated region
        $region25: #{tpu_custom_call.1} parent=15 // pred_check
          %p259 = pneg %p114
        $region26: #{tpu_custom_call.1} parent=15 // pred_check_branch
          %261 = sbr.rel (%p259) target = $region28
        $region27: #{tpu_custom_call.1} parent=15 // pred_region
          %s262 = smul.u32 2, %s32
          %p263 = scmp.lt.s32.totalorder %s31, 1
          %s264 = scalar_select %p263, %s31, 1
          %p265 = scmp.lt.s32.totalorder %s262, 1
          %s266 = scalar_select %p265, %s262, 1
          %s267 = smul.addr %s264, 2
          %s268 = sadd.s32 %s266, %s267
          %s269 = scalar_lea.vmem %s2, %s268
          %s270 = smul.u32 2, %s32
        $region28: #{tpu_custom_call.1} parent=15 // pred_fallthru
          _
      $region16: #{tpu_custom_call.1} parent=5 // pred_fallthru
        _
      %p271 = scmp.le.s32.totalorder 1, %s24
      %p272 = scmp.lt.s32.totalorder %s24, 3
      %p273 = pnand %p271, %p272
      %p274 = pneg %p273
      // Predicated region
      $region29: #{tpu_custom_call.1} parent=5 // pred_check
        _
      $region30: #{tpu_custom_call.1} parent=5 // pred_check_branch
        %276 = sbr.rel (%p273) target = $region32
      $region31: #{tpu_custom_call.1} parent=5 // pred_region
        %s277 = ssub.s32 %s24, 1
        %s278 = sand.u32 %s51, 1
        %s279 = scalar_lea.sflag [#allocation3], %s278
        %s280 = sand.u32 %s51, 1
        %s281 = smul.addr %s280, 16
        %s282 = scalar_lea.vmem [#allocation2], %s281
        // Predicated region
        $region33: #{tpu_custom_call.1} parent=31 // pred_check
          %p283 = pneg %p64
        $region34: #{tpu_custom_call.1} parent=31 // pred_check_branch
          %285 = sbr.rel (%p283) target = $region36
        $region35: #{tpu_custom_call.1} parent=31 // pred_region
          %286 = dma.done %s279, 256
        $region36: #{tpu_custom_call.1} parent=31 // pred_fallthru
          _
        %s287 = sand.u32 %s79, 1
        %s288 = scalar_lea.sflag [#allocation6], %s287
        %s289 = sand.u32 %s79, 1
        %s290 = smul.addr %s289, 16
        %s291 = scalar_lea.vmem [#allocation5], %s290
        // Predicated region
        $region37: #{tpu_custom_call.1} parent=31 // pred_check
          %p292 = pneg %p92
        $region38: #{tpu_custom_call.1} parent=31 // pred_check_branch
          %294 = sbr.rel (%p292) target = $region40
        $region39: #{tpu_custom_call.1} parent=31 // pred_region
          %295 = dma.done %s288, 256
        $region40: #{tpu_custom_call.1} parent=31 // pred_fallthru
          _
        %s296 = sand.u32 %s51, 1
        %s297 = scalar_lea.sflag [#allocation3], %s296
        %s298 = sand.u32 %s51, 1
        %s299 = smul.addr %s298, 16
        %s300 = scalar_lea.vmem [#allocation2], %s299
        %p301 = pneg %p64
        %p302 = pneg %p61
        %s303 = sand.u32 %s79, 1
        %s304 = scalar_lea.sflag [#allocation6], %s303
        %s305 = sand.u32 %s79, 1
        %s306 = smul.addr %s305, 16
        %s307 = scalar_lea.vmem [#allocation5], %s306
        %p308 = pneg %p92
        %p309 = pneg %p89
        %s310 = smul.u32 2, %s34
        %p311 = scmp.lt.s32.totalorder %s33, 1
        %s312 = scalar_select %p311, %s33, 1
        %p313 = scmp.lt.s32.totalorder %s310, 1
        %s314 = scalar_select %p313, %s310, 1
        %s315 = smul.addr %s312, 2
        %s316 = sadd.s32 %s314, %s315
        %s317 = scalar_lea.vmem %s2, %s316
        %p318 = pneg %p120
        %p319 = pneg %p117
        %p320 = pneg %p146
        %p321 = pneg %p143
        %s322 = sand.u32 %s133, 1
        %s323 = scalar_lea.sflag [#allocation4], %s322
        %s324 = sand.u32 %s133, 1
        %s325 = smul.addr %s324, 2
        %s326 = scalar_lea.vmem [#allocation7], %s325
        %p327 = pneg %p172
        %p328 = pneg %p169
        %s329 = sand.u32 %s29, 1
        %s330 = scalar_lea.sflag [#allocation9], %s329
        %s331 = sand.u32 %s159, 1
        %s332 = smul.addr %s331, 2
        %s333 = scalar_lea.vmem [#allocation8], %s332
        %p334 = pneg %p198
        %p335 = pneg %p195
        %s336 = sand.u32 %s29, 1
        %s337 = scalar_lea.sflag [#allocation9], %s336
        %s338 = sand.u32 %s185, 1
        %s339 = smul.addr %s338, 2
        %s340 = scalar_lea.vmem [#allocation10], %s339
        %s341 = smul.u32 2, %s34
        %s342 = smul.u32 2, %s34
        %s343 = smul.u32 2, %s34
        %p344 = scmp.lt.s32.totalorder %s33, 1
        %s345 = scalar_select %p344, %s33, 1
        %p346 = scmp.lt.s32.totalorder %s343, 1
        %s347 = scalar_select %p346, %s343, 1
        %s348 = smul.addr %s345, 2
        %s349 = sadd.s32 %s347, %s348
        %s350 = scalar_lea.vmem %s2, %s349
        %s351 = smul.u32 2, %s34
        %p352 = scmp.eq.s32.totalorder %s34, 0
        // Predicated region
        $region41: #{tpu_custom_call.1} parent=31 // pred_check
          %p353 = pneg %p352
        $region42: #{tpu_custom_call.1} parent=31 // pred_check_branch
          %355 = sbr.rel (%p353) target = $region44
        $region43: #{tpu_custom_call.1} parent=31 // pred_region
          %v356 = vlaneseq
          %vm357 = vcmp.ge.s32.totalorder %v356, 0
          %vm358 = vcmp.lt.s32.totalorder %v356, 256
          %vm359 = vmand %vm357, %vm358
          %360 = vst.msk [vmem:[%s326] sm:$0x3] %vm359, 0.0
          %361 = vst.msk [vmem:[%s333] sm:$0x3] %vm359, 0.0
          %362 = vst.msk [vmem:[%s340] sm:$0x3] %vm359, 0.0
        $region44: #{tpu_custom_call.1} parent=31 // pred_fallthru
          _
        %v363 = vld [vmem:[%s350] sm:$0x3]
        %vm364 = vcmp.ne.s32.totalorder %v363, 255
        %v365 = vsel %vm364, %v363, 0
        %v366 = vlaneseq
        %v367 = vshrl.u32 %v366, 7
        %v368 = vlaneseq
        %v369 = vshrl.u32 %v368, 7
        %v370 = vsub.s32 0, %v369
        %v371 = vrot.slane %v365, %v370
        %v372 = vlaneseq
        %v373 = vshrl.u32 %v372, 7
        %v374 = vsub.s32 1, %v373
        %v375 = vrot.slane %v365, %v374
        %vm376 = vcmp.eq.s32.totalorder %v367, %v371
        %vm377 = vcmp.eq.s32.totalorder %v367, %v375
        %v378 = vsel %vm364, 1, 0
        %v379 = vcvt.s32.f32 %v378
        %v380 = vld [vmem:[%s326] sm:$0x3]
        %v381 = vld [vmem:[%s282] sm:$0xff]
        %v382 = vld [vmem:[%s282 + $0x8] sm:$0xff]
        %v383 = vrot.slane %v381, 4
        %v384 = vmax.f32 %v381, %v383
        %v385 = vrot.slane %v384, 2
        %v386 = vmax.f32 %v384, %v385
        %v387 = vrot.slane %v386, 1
        %v388 = vmax.f32 %v386, %v387
        %v389 = vrot.slane %v382, 4
        %v390 = vmax.f32 %v382, %v389
        %v391 = vrot.slane %v390, 2
        %v392 = vmax.f32 %v390, %v391
        %v393 = vrot.slane %v392, 1
        %v394 = vmax.f32 %v392, %v393
        %v395 = vsub.f32 %v381, %v388
        %v396 = vsub.f32 %v382, %v394
        %v397 = vmul.f32 %v395, 1.442695
        %v398 = vpow.pop %v397
        %v399 = vmul.f32 %v396, 1.442695
        %v400 = vpow.pop %v399
        %v401 = vrot.slane %v398, 4
        %v402 = vadd.f32 %v398, %v401
        %v403 = vrot.slane %v402, 2
        %v404 = vadd.f32 %v402, %v403
        %v405 = vrot.slane %v404, 1
        %v406 = vadd.f32 %v404, %v405
        %v407 = vrot.slane %v400, 4
        %v408 = vadd.f32 %v400, %v407
        %v409 = vrot.slane %v408, 2
        %v410 = vadd.f32 %v408, %v409
        %v411 = vrot.slane %v410, 1
        %v412 = vadd.f32 %v410, %v411
        %v413 = vlog2.pop %v406
        %v414 = vmul.f32 %v413, 0.6931472
        %v415 = vlog2.pop %v412
        %v416 = vmul.f32 %v415, 0.6931472
        %v417 = vadd.f32 %v414, %v388
        %v418 = vadd.f32 %v416, %v394
        %v419 = vsel %vm376, %v381, 0.0
        %v420 = vsel %vm377, %v382, 0.0
        %v421 = vrot.slane %v419, 4
        %v422 = vadd.f32 %v419, %v421
        %v423 = vrot.slane %v422, 2
        %v424 = vadd.f32 %v422, %v423
        %v425 = vrot.slane %v424, 1
        %v426 = vadd.f32 %v424, %v425
        %v427 = vrot.slane %v420, 4
        %v428 = vadd.f32 %v420, %v427
        %v429 = vrot.slane %v428, 2
        %v430 = vadd.f32 %v428, %v429
        %v431 = vrot.slane %v430, 1
        %v432 = vadd.f32 %v430, %v431
        %v433 = vsub.f32 %v417, %v426
        %v434 = vsub.f32 %v418, %v432
        %v436 = vlaneseq
        %v437 = vshrl.u32 %v436, 7
        %v438 = vsub.s32 0, %v437
        %v439 = vrot.slane %v379, %v438
        %v440 = vlaneseq
        %v441 = vshrl.u32 %v440, 7
        %v442 = vsub.s32 1, %v441
        %v443 = vrot.slane %v379, %v442
        %v446 = vmul.f32 %v433, %v439
        %v447 = vmul.f32 %v434, %v443
        %v450 = vcombine.low %v446, %v447
        %v452 = vunpack.c.l.s4 1966171168
        %v453 = vunpack.c.0.s8 %v452
        %v454 = vlaneseq
        %v455 = vshrl.u32 %v454, 7
        %v456 = vsub.s32 %v453, %v455
        %v457 = vrot.slane %v450, %v456
        %v459 = vunpack.c.l.s4 1966171168
        %v460 = vunpack.c.0.s8 %v459
        %v461 = vlaneseq
        %v462 = vshrl.u32 %v461, 7
        %v463 = vsub.s32 %v460, %v462
        %v464 = vrot.slane %v457, %v463
        %v466 = vadd.f32 %v380, %v464
        %v467 = vlaneseq
        %vm468 = vcmp.ge.s32.totalorder %v467, 0
        %vm469 = vcmp.lt.s32.totalorder %v467, 256
        %vm470 = vmand %vm468, %vm469
        %471 = vst.msk [vmem:[%s326] sm:$0x3] %vm470, %v466
        %v472 = vld [vmem:[%s333] sm:$0x3]
        %v473 = vld [vmem:[%s291] sm:$0xff]
        %v474 = vld [vmem:[%s291 + $0x8] sm:$0xff]
        %v475 = vrot.slane %v473, 4
        %v476 = vmax.f32 %v473, %v475
        %v477 = vrot.slane %v476, 2
        %v478 = vmax.f32 %v476, %v477
        %v479 = vrot.slane %v478, 1
        %v480 = vmax.f32 %v478, %v479
        %v481 = vrot.slane %v474, 4
        %v482 = vmax.f32 %v474, %v481
        %v483 = vrot.slane %v482, 2
        %v484 = vmax.f32 %v482, %v483
        %v485 = vrot.slane %v484, 1
        %v486 = vmax.f32 %v484, %v485
        %v487 = vsub.f32 %v473, %v480
        %v488 = vsub.f32 %v474, %v486
        %v489 = vmul.f32 %v487, 1.442695
        %v490 = vpow.pop %v489
        %v491 = vmul.f32 %v488, 1.442695
        %v492 = vpow.pop %v491
        %v493 = vrot.slane %v490, 4
        %v494 = vadd.f32 %v490, %v493
        %v495 = vrot.slane %v494, 2
        %v496 = vadd.f32 %v494, %v495
        %v497 = vrot.slane %v496, 1
        %v498 = vadd.f32 %v496, %v497
        %v499 = vrot.slane %v492, 4
        %v500 = vadd.f32 %v492, %v499
        %v501 = vrot.slane %v500, 2
        %v502 = vadd.f32 %v500, %v501
        %v503 = vrot.slane %v502, 1
        %v504 = vadd.f32 %v502, %v503
        %v505 = vlog2.pop %v498
        %v506 = vmul.f32 %v505, 0.6931472
        %v507 = vlog2.pop %v504
        %v508 = vmul.f32 %v507, 0.6931472
        %v509 = vadd.f32 %v506, %v480
        %v510 = vadd.f32 %v508, %v486
        %v511 = vsel %vm376, %v473, 0.0
        %v512 = vsel %vm377, %v474, 0.0
        %v513 = vrot.slane %v511, 4
        %v514 = vadd.f32 %v511, %v513
        %v515 = vrot.slane %v514, 2
        %v516 = vadd.f32 %v514, %v515
        %v517 = vrot.slane %v516, 1
        %v518 = vadd.f32 %v516, %v517
        %v519 = vrot.slane %v512, 4
        %v520 = vadd.f32 %v512, %v519
        %v521 = vrot.slane %v520, 2
        %v522 = vadd.f32 %v520, %v521
        %v523 = vrot.slane %v522, 1
        %v524 = vadd.f32 %v522, %v523
        %v525 = vsub.f32 %v509, %v518
        %v526 = vsub.f32 %v510, %v524
        %v527 = vmul.f32 %v525, %v439
        %v528 = vmul.f32 %v526, %v443
        %v531 = vcombine.low %v527, %v528
        %v533 = vunpack.c.l.s4 1966171168
        %v534 = vunpack.c.0.s8 %v533
        %v535 = vlaneseq
        %v536 = vshrl.u32 %v535, 7
        %v537 = vsub.s32 %v534, %v536
        %v538 = vrot.slane %v531, %v537
        %v540 = vunpack.c.l.s4 1966171168
        %v541 = vunpack.c.0.s8 %v540
        %v542 = vlaneseq
        %v543 = vshrl.u32 %v542, 7
        %v544 = vsub.s32 %v541, %v543
        %v545 = vrot.slane %v538, %v544
        %v547 = vadd.f32 %v472, %v545
        %548 = vst.msk [vmem:[%s333] sm:$0x3] %vm470, %v547
        %v549 = vld [vmem:[%s340] sm:$0x3]
        %v550 = vadd.f32 %v549, %v379
        %551 = vst.msk [vmem:[%s340] sm:$0x3] %vm470, %v550
        %s552 = sand.u32 %s133, 1
        %s553 = scalar_lea.sflag [#allocation4], %s552
        %s554 = sand.u32 %s133, 1
        %s555 = smul.addr %s554, 2
        %s556 = scalar_lea.vmem [#allocation7], %s555
        %s557 = sand.u32 %s29, 1
        %s558 = scalar_lea.sflag [#allocation9], %s557
        %s559 = sand.u32 %s159, 1
        %s560 = smul.addr %s559, 2
        %s561 = scalar_lea.vmem [#allocation8], %s560
        %s562 = sand.u32 %s29, 1
        %s563 = scalar_lea.sflag [#allocation9], %s562
        %s564 = sand.u32 %s185, 1
        %s565 = smul.addr %s564, 2
        %s566 = scalar_lea.vmem [#allocation10], %s565
        // Predicated region
        $region45: #{tpu_custom_call.1} parent=31 // pred_check
          %p567 = pneg %p143
        $region46: #{tpu_custom_call.1} parent=31 // pred_check_branch
          %569 = sbr.rel (%p567) target = $region48
        $region47: #{tpu_custom_call.1} parent=31 // pred_region
          %s571 = ssub.s32 32, 32
          %572 = vsyncadd %s553, %s571
          %s573 = smul.addr %s33, 2
          %s574 = smul.addr %s573, 16
          %s575 = scalar_lea.hbm %s3, %s574
          %s577 = sshll.u32 %s556, 4
          %s578 = int_to_ptr.vmem [resolvable:$true] %s577
          %580 = dma.vmem_to_hbm [thread:$0]  %s578, 32, %s575, %s553
        $region48: #{tpu_custom_call.1} parent=31 // pred_fallthru
          _
        // Predicated region
        $region49: #{tpu_custom_call.1} parent=31 // pred_check
          %p581 = pneg %p169
        $region50: #{tpu_custom_call.1} parent=31 // pred_check_branch
          %583 = sbr.rel (%p581) target = $region52
        $region51: #{tpu_custom_call.1} parent=31 // pred_region
          %s585 = ssub.s32 32, 32
          %586 = vsyncadd %s558, %s585
          %s587 = smul.addr %s33, 2
          %s588 = smul.addr %s587, 16
          %s589 = scalar_lea.hbm %s4, %s588
          %s591 = sshll.u32 %s561, 4
          %s592 = int_to_ptr.vmem [resolvable:$true] %s591
          %594 = dma.vmem_to_hbm [thread:$0]  %s592, 32, %s589, %s558
        $region52: #{tpu_custom_call.1} parent=31 // pred_fallthru
          _
        // Predicated region
        $region53: #{tpu_custom_call.1} parent=31 // pred_check
          %p595 = pneg %p195
        $region54: #{tpu_custom_call.1} parent=31 // pred_check_branch
          %597 = sbr.rel (%p595) target = $region56
        $region55: #{tpu_custom_call.1} parent=31 // pred_region
          %s599 = ssub.s32 32, 32
          %600 = vsyncadd %s563, %s599
          %s601 = smul.addr %s33, 2
          %s602 = smul.addr %s601, 16
          %s603 = scalar_lea.hbm %s5, %s602
          %s605 = sshll.u32 %s566, 4
          %s606 = int_to_ptr.vmem [resolvable:$true] %s605
          %608 = dma.vmem_to_hbm [thread:$0]  %s606, 32, %s603, %s563
        $region56: #{tpu_custom_call.1} parent=31 // pred_fallthru
          _
      $region32: #{tpu_custom_call.1} parent=5 // pred_fallthru
        _
      %p609 = scmp.le.s32.totalorder 2, %s24
      // Predicated region
      $region57: #{tpu_custom_call.1} parent=5 // pred_check
        %p610 = pneg %p609
      $region58: #{tpu_custom_call.1} parent=5 // pred_check_branch
        %612 = sbr.rel (%p610) target = $region60
      $region59: #{tpu_custom_call.1} parent=5 // pred_region
        %s613 = ssub.s32 %s24, 2
        // Predicated region
        $region61: #{tpu_custom_call.1} parent=59 // pred_check
          %p614 = pneg %p149
        $region62: #{tpu_custom_call.1} parent=59 // pred_check_branch
          %616 = sbr.rel (%p614) target = $region64
        $region63: #{tpu_custom_call.1} parent=59 // pred_region
          %s617 = sand.u32 %s134, 1
          %s618 = scalar_lea.sflag [#allocation4], %s617
          %s619 = sand.u32 %s134, 1
          %s620 = smul.addr %s619, 2
          %s621 = scalar_lea.vmem [#allocation7], %s620
          %622 = dma.done %s618, 32
        $region64: #{tpu_custom_call.1} parent=59 // pred_fallthru
          _
        // Predicated region
        $region65: #{tpu_custom_call.1} parent=59 // pred_check
          %p623 = pneg %p175
        $region66: #{tpu_custom_call.1} parent=59 // pred_check_branch
          %625 = sbr.rel (%p623) target = $region68
        $region67: #{tpu_custom_call.1} parent=59 // pred_region
          %s626 = sand.u32 %s30, 1
          %s627 = scalar_lea.sflag [#allocation9], %s626
          %s628 = sand.u32 %s160, 1
          %s629 = smul.addr %s628, 2
          %s630 = scalar_lea.vmem [#allocation8], %s629
          %631 = dma.done %s627, 32
        $region68: #{tpu_custom_call.1} parent=59 // pred_fallthru
          _
        // Predicated region
        $region69: #{tpu_custom_call.1} parent=59 // pred_check
          %p632 = pneg %p201
        $region70: #{tpu_custom_call.1} parent=59 // pred_check_branch
          %634 = sbr.rel (%p632) target = $region72
        $region71: #{tpu_custom_call.1} parent=59 // pred_region
          %s635 = sand.u32 %s30, 1
          %s636 = scalar_lea.sflag [#allocation9], %s635
          %s637 = sand.u32 %s186, 1
          %s638 = smul.addr %s637, 2
          %s639 = scalar_lea.vmem [#allocation10], %s638
          %640 = dma.done %s636, 32
        $region72: #{tpu_custom_call.1} parent=59 // pred_fallthru
          _
      $region60: #{tpu_custom_call.1} parent=5 // pred_fallthru
        _
    $region6: #{tpu_custom_call.1} parent=1 // loop_footer
      %s28 = sadd.s32 1, %s24
    $region7: #{tpu_custom_call.1} parent=1 // loop_footer_branch
      %23 = sbr.rel target = $region3
    $region8: #{tpu_custom_call.1} parent=1 // loop_exit
      _
    %641 = vsyncpa [#allocation3], 1
    %s642 = scalar_lea.sflag [#allocation3], 1
    %643 = vsyncpa %s642, 1
    %644 = vsyncpa [#allocation6], 1
    %s645 = scalar_lea.sflag [#allocation6], 1
    %646 = vsyncpa %s645, 1
    %647 = vsyncpa [#allocation4], 1
    %s648 = scalar_lea.sflag [#allocation4], 1
    %649 = vsyncpa %s648, 1
    %650 = vsyncpa [#allocation9], 1
    %s651 = scalar_lea.sflag [#allocation9], 1
    %652 = vsyncpa %s651, 1

</llo_original>
